<compile_context>
chip_gen: v5e
topology: v5e:2x2
jax: 0.10.0
libtpu: 0.0.40
codegen_flags: <defaults>
</compile_context>

<pallas_src>
import functools

import jax
import jax.numpy as jnp
from jax import lax
from jax.experimental import pallas as pl
from jax.experimental.pallas import tpu as pltpu


def _round_up(v: int, mult: int) -> int:
    return ((v + mult - 1) // mult) * mult


@functools.lru_cache(maxsize=1)
def _default_exp_dtype():
    """bf16 exp only where the EUP has a bf16 path (v6e / v7x); f32 otherwise."""
    try:
        kind = jax.devices()[0].device_kind.lower()
    except Exception:
        return jnp.dtype(jnp.float32)
    if "v6" in kind or "v7" in kind:
        return jnp.dtype(jnp.bfloat16)
    return jnp.dtype(jnp.float32)       # v5e & older: no bf16 EUP/VPU path


def _make_svm_kernel(kernel_type: str, kpar: float, exp_dtype):
    """Builds the kernel body with kernel_type / kpar / exp dtype baked in."""
    assert kernel_type in ("linear", "polynomial", "poly", "rbf"), kernel_type
    kpar = float(kpar)
    is_poly = kernel_type in ("polynomial", "poly")
    poly_int_degree = is_poly and (kpar == int(kpar)) and (kpar >= 0.0)

    def svm_kernel(xtr_ref, xt_ref, beta_ref, xn_ref, zn_ref, b_ref, out_ref):
        n_idx = pl.program_id(1)

        # The (1, TM) output block is revisited across the whole n axis (its
        # block index only depends on i), so it doubles as the accumulator:
        # seed it with the bias on the first n-tile (no scratch needed).
        @pl.when(n_idx == 0)
        def _init():
            out_ref[...] = jnp.zeros_like(out_ref) + b_ref[0, 0]

        # Gram tile: (TN, d) @ (d, TM) -> (TN, TM). bf16 MXU path with f32
        # accumulation; x arrives pre-transposed, so no in-kernel XLU transpose.
        g = jnp.dot(xtr_ref[...], xt_ref[...],
                    preferred_element_type=jnp.float32)

        if kernel_type == "linear":
            k_tile = g
        elif is_poly:
            base = g + 1.0
            if poly_int_degree:
                # Static integer degree: VPU multiplies, no EUP exp/log.
                k_tile = lax.integer_pow(base, int(kpar))
            else:
                k_tile = base ** kpar
        else:  # rbf: exp(-kpar * ||x_i - z_j||^2); f32 norms precomputed outside.
            d2 = jnp.maximum(xn_ref[...] + zn_ref[...] - 2.0 * g, 0.0)
            # RBF is EUP-bound; exp runs in bf16 on v6e/v7x, f32 on v5e.
            k_tile = jnp.exp((-kpar * d2).astype(exp_dtype)).astype(jnp.float32)

        # Fused reduction: out(1, TM) += beta(1, TN) @ K(TN, TM), f32 accum.
        # NOTE: if profiling ever shows the MXU-feed slot binding on the
        # linear / int-poly path, this matvec can move to the VPU
        # (k_tile * broadcast beta column, jnp.sum over axis 0).
        out_ref[...] += jnp.dot(beta_ref[...], k_tile,
                                preferred_element_type=jnp.float32)

    return svm_kernel


@functools.partial(
    jax.jit,
    static_argnames=("kernel_type", "kpar", "tm", "tn", "matmul_dtype",
                     "exp_dtype", "linear_shortcut"))
def _kernelized_svm_forward(xTr, x, beta, b, *, kernel_type, kpar, tm, tn,
                            matmul_dtype, exp_dtype, linear_shortcut):
    n, d = xTr.shape
    m, dz = x.shape
    assert d == dz, f"Input dimensions do not match X:{d} , Z:{dz}"
    assert beta.shape == (n,)

    xTr = xTr.astype(jnp.float32)
    x = x.astype(jnp.float32)
    beta = beta.astype(jnp.float32)
    b = b.astype(jnp.float32)

    if kernel_type == "linear" and linear_shortcut:
        # beta @ (xTr @ x.T) == (beta @ xTr) @ x.T : O((n+m)d), no K pass needed.
        w = jnp.dot(beta, xTr, precision=lax.Precision.HIGHEST)        # (d,)
        return jnp.dot(x, w, precision=lax.Precision.HIGHEST) + b[0]   # (m,)

    # ---------------- tile selection ----------------
    m128 = _round_up(m, 128)
    n128 = _round_up(n, 128)
    TM = min(int(tm), m128)
    TN = min(int(tn), n128)

    # v7x occupancy: make the "parallel" m axis >= 2 tiles when m permits so
    # both TensorCores get work.
    if m128 >= 256 and (m128 + TM - 1) // TM < 2:
        TM = max(128, _round_up(m128 // 2, 128))

    # Large-d / VMEM guard: double-buffered streamed tiles + ~3 (TN,TM) f32
    # intermediates must fit a conservative budget on every generation
    # (v7x has only 64 MiB physical VMEM per TensorCore).
    in_item = jnp.dtype(matmul_dtype).itemsize

    def _footprint(tn_, tm_):
        streamed = 2 * ((tn_ * d + d * tm_) * in_item + (2 * tn_ + tm_) * 4)
        intermediates = 3 * tn_ * tm_ * 4
        return streamed + intermediates + 2 * tm_ * 4

    VMEM_BUDGET = 40 * 1024 * 1024
    while _footprint(TN, TM) > VMEM_BUDGET and max(TN, TM) > 128:
        if TN >= TM:
            TN = max(128, TN // 2)
        else:
            TM = max(128, TM // 2)
    # TODO(synk): for very large d (>~8K) add a third grid axis over d with a
    # (TN, TM) f32 scratch accumulator instead of shrinking TN/TM.

    m_pad = _round_up(m, TM)
    n_pad = _round_up(n, TN)

    # ---------------- wrapper-side preprocessing (done once) ----------------
    # Zero padding: padded training rows get beta == 0 (no contribution);
    # padded query columns are sliced off at the end.
    xTr_p = jnp.pad(xTr, ((0, n_pad - n), (0, 0)))
    x_p = jnp.pad(x, ((0, m_pad - m), (0, 0)))
    beta_row = jnp.pad(beta, (0, n_pad - n)).reshape(1, n_pad)
    b_smem = b.reshape(1, 1)

    # RBF row norms stay f32 (cancellation safety); the streamed Gram operands
    # are cast to the (bf16) MXU dtype — halves their HBM traffic too.
    xn = jnp.sum(xTr_p * xTr_p, axis=1, keepdims=True)          # (n_pad, 1) f32
    zn = jnp.sum(x_p * x_p, axis=1).reshape(1, m_pad)           # (1, m_pad) f32
    xTr_s = xTr_p.astype(matmul_dtype)                          # (n_pad, d)
    xT_s = x_p.T.astype(matmul_dtype)                           # (d, m_pad)

    grid = (m_pad // TM, n_pad // TN)   # parallel m-tiles, n reduction last
    kernel = _make_svm_kernel(kernel_type, float(kpar), exp_dtype)

    flops = 2 * n_pad * m_pad * d + 2 * n_pad * m_pad
    transcendentals = n_pad * m_pad if kernel_type == "rbf" else 0
    bytes_accessed = ((n_pad * d * in_item) * (m_pad // TM)
                      + (d * m_pad * in_item) * (n_pad // TN)
                      + (2 * n_pad + m_pad) * 4 + m_pad * 4)

    out = pl.pallas_call(
        kernel,
        out_shape=jax.ShapeDtypeStruct((1, m_pad), jnp.float32),
        grid_spec=pltpu.PrefetchScalarGridSpec(
            num_scalar_prefetch=0,
            grid=grid,
            in_specs=[
                pl.BlockSpec((TN, d), lambda i, j: (j, 0)),   # xTr tile
                pl.BlockSpec((d, TM), lambda i, j: (0, i)),   # x^T tile
                pl.BlockSpec((1, TN), lambda i, j: (0, j)),   # beta tile
                pl.BlockSpec((TN, 1), lambda i, j: (j, 0)),   # train norms
                pl.BlockSpec((1, TM), lambda i, j: (0, i)),   # query norms
                pl.BlockSpec(memory_space=pltpu.SMEM),        # bias scalar
            ],
            out_specs=pl.BlockSpec((1, TM), lambda i, j: (0, i)),
        ),
        compiler_params=pltpu.CompilerParams(
            dimension_semantics=("parallel", "arbitrary"),
            vmem_limit_bytes=56 * 1024 * 1024),
        cost_estimate=pl.CostEstimate(
            flops=flops, transcendentals=transcendentals,
            bytes_accessed=bytes_accessed),
    )(xTr_s, xT_s, beta_row, xn, zn, b_smem)

    return out[0, :m]


def kernelized_svm_forward(xTr, x, beta, b, *, kernel_type="rbf", kpar=0.0,
                           tm=1024, tn=1024, matmul_dtype=jnp.bfloat16,
                           exp_dtype=None, linear_shortcut=True):
    """
    xTr:  (n, d) training vectors
    x:    (m, d) query vectors
    beta: (n,)   dual coefficients
    b:    (1,)   bias
    returns: (m,) = beta @ K(xTr, x) + b
    """
    if exp_dtype is None:
        exp_dtype = _default_exp_dtype()
    return _kernelized_svm_forward(
        xTr, x, beta, b,
        kernel_type=kernel_type, kpar=float(kpar), tm=int(tm), tn=int(tn),
        matmul_dtype=jnp.dtype(matmul_dtype), exp_dtype=jnp.dtype(exp_dtype),
        linear_shortcut=bool(linear_shortcut))


def _reference_forward(xTr, x, beta, b, kernel_type, kpar):
    """Pure-JAX ground-truth reference matching the PyTorch semantics."""
    g = jnp.einsum("ij,kj->ik", xTr, x, precision=lax.Precision.HIGHEST)
    if kernel_type == "linear":
        K = g
    elif kernel_type in ("polynomial", "poly"):
        K = (g + 1.0) ** kpar
    else:
        xn = jnp.sum(xTr * xTr, axis=1, keepdims=True)
        zn = jnp.sum(x * x, axis=1, keepdims=True).T
        d2 = jnp.maximum(xn + zn - 2.0 * g, 0.0)
        K = jnp.exp(-kpar * d2)
    return jnp.dot(beta, K, precision=lax.Precision.HIGHEST) + b


def _rel_err(out, ref):
    out = jnp.asarray(out, jnp.float32)
    ref = jnp.asarray(ref, jnp.float32)
    return float(jnp.max(jnp.abs(out - ref)) / (jnp.max(jnp.abs(ref)) + 1e-6))


if __name__ == "__main__":
    key = jax.random.PRNGKey(0)

    # --- case 1: module-sized demo (dim = n must match beta length) ---
    n, d, m = 8, 32, 8
    k_xtr, k_x, k_beta, k_b = jax.random.split(key, 4)
    xTr = jax.random.normal(k_xtr, (n, d), dtype=jnp.float32)
    x = jax.random.normal(k_x, (m, d), dtype=jnp.float32)
    beta = jax.random.uniform(k_beta, (n,), dtype=jnp.float32)   # torch.rand-style
    b = jax.random.uniform(k_b, (1,), dtype=jnp.float32)

    ref_rbf = _reference_forward(xTr, x, beta, b, "rbf", 0.5)
    ref_lin = _reference_forward(xTr, x, beta, b, "linear", 0.0)
    ref_poly = _reference_forward(xTr, x, beta, b, "polynomial", 3.0)

    # precision-matched references for the default bf16 streaming config
    xTr_r = xTr.astype(jnp.bfloat16).astype(jnp.float32)
    x_r = x.astype(jnp.bfloat16).astype(jnp.float32)
    ref_rbf_r = _reference_forward(xTr_r, x_r, beta, b, "rbf", 0.5)
    ref_poly_r = _reference_forward(xTr_r, x_r, beta, b, "polynomial", 3.0)

    # strict f32 Pallas paths vs the f32 ground-truth reference
    out = jax.block_until_ready(kernelized_svm_forward(
        xTr, x, beta, b, kernel_type="rbf", kpar=0.5,
        matmul_dtype=jnp.float32, exp_dtype=jnp.float32))
    assert out.shape == (m,)
    assert _rel_err(out, ref_rbf) < 1e-4

    out = jax.block_until_ready(kernelized_svm_forward(
        xTr, x, beta, b, kernel_type="polynomial", kpar=3.0,
        matmul_dtype=jnp.float32))
    assert _rel_err(out, ref_poly) < 1e-3

    out = jax.block_until_ready(kernelized_svm_forward(
        xTr, x, beta, b, kernel_type="linear", kpar=0.0,
        matmul_dtype=jnp.float32, linear_shortcut=False))
    assert _rel_err(out, ref_lin) < 1e-4

    # linear algebraic shortcut (default path: no Pallas K pass at all)
    out = jax.block_until_ready(kernelized_svm_forward(
        xTr, x, beta, b, kernel_type="linear", kpar=0.0))
    assert _rel_err(out, ref_lin) < 1e-4

    # default perf config: bf16 streamed Gram operands (+ bf16 exp on v6e/v7x),
    # validated against precision-matched (bf16-rounded input) references.
    out = jax.block_until_ready(kernelized_svm_forward(
        xTr, x, beta, b, kernel_type="rbf", kpar=0.5))
    assert _rel_err(out, ref_rbf_r) < 5e-2

    out = jax.block_until_ready(kernelized_svm_forward(
        xTr, x, beta, b, kernel_type="polynomial", kpar=3.0))
    assert _rel_err(out, ref_poly_r) < 5e-2

    # --- case 2: non-multiple shapes -> real multi-tile grid + padding ---
    n2, d2_, m2 = 300, 32, 260
    k1, k2, k3, k4 = jax.random.split(jax.random.PRNGKey(1), 4)
    xTr2 = jax.random.normal(k1, (n2, d2_), dtype=jnp.float32)
    x2 = jax.random.normal(k2, (m2, d2_), dtype=jnp.float32)
    beta2 = jax.random.uniform(k3, (n2,), dtype=jnp.float32)
    b2 = jax.random.uniform(k4, (1,), dtype=jnp.float32)

    ref2 = _reference_forward(xTr2, x2, beta2, b2, "rbf", 0.1)
    ref2_r = _reference_forward(xTr2.astype(jnp.bfloat16).astype(jnp.float32),
                                x2.astype(jnp.bfloat16).astype(jnp.float32),
                                beta2, b2, "rbf", 0.1)

    # strict f32, 2x2 grid with padding (n: 300 -> 512, m: 260 -> 512)
    out2 = jax.block_until_ready(kernelized_svm_forward(
        xTr2, x2, beta2, b2, kernel_type="rbf", kpar=0.1, tm=256, tn=256,
        matmul_dtype=jnp.float32, exp_dtype=jnp.float32))
    assert out2.shape == (m2,)
    assert _rel_err(out2, ref2) < 1e-4

    # default bf16 config on the same multi-tile problem
    out2 = jax.block_until_ready(kernelized_svm_forward(
        xTr2, x2, beta2, b2, kernel_type="rbf", kpar=0.1, tm=256, tn=256))
    assert _rel_err(out2, ref2_r) < 5e-2

    print("KERNEL_OK")
</pallas_src>

<mosaic_0001>
module attributes {stable_mosaic.version = 11 : i64} {
  func.func @svm_kernel(%arg0: i32, %arg1: i32, %arg2: memref<128x32xf32, #tpu.memory_space<vmem>>, %arg3: memref<32x128xf32, #tpu.memory_space<vmem>>, %arg4: memref<1x128xf32, #tpu.memory_space<vmem>>, %arg5: memref<128x1xf32, #tpu.memory_space<vmem>>, %arg6: memref<1x128xf32, #tpu.memory_space<vmem>>, %arg7: memref<1x1xf32, #tpu.memory_space<smem>>, %arg8: memref<1x128xf32, #tpu.memory_space<vmem>>) attributes {dimension_semantics = [#tpu.dimension_semantics<parallel>, #tpu.dimension_semantics<arbitrary>], iteration_bounds = array<i64: 1, 1>, scalar_prefetch = 0 : i64, scratch_operands = 0 : i64, tpu.core_type = #tpu.core_type<tc>, window_params = [{transform_indices = @transform_0, window_bounds = array<i64: 128, 32>}, {transform_indices = @transform_1, window_bounds = array<i64: 32, 128>}, {transform_indices = @transform_2, window_bounds = array<i64: 1, 128>}, {transform_indices = @transform_3, window_bounds = array<i64: 128, 1>}, {transform_indices = @transform_4, window_bounds = array<i64: 1, 128>}, {transform_indices = @transform_5, window_bounds = array<i64: 1, 1>}, {transform_indices = @transform_6, window_bounds = array<i64: 1, 128>}]} {
    %c0_i32 = arith.constant 0 : i32
    %0 = arith.cmpi eq, %arg1, %c0_i32 : i32
    %1 = arith.extui %0 : i1 to i32
    %c0_i32_0 = arith.constant 0 : i32
    %2 = arith.cmpi ne, %1, %c0_i32_0 : i32
    scf.if %2 {
      %cst_18 = arith.constant 0.000000e+00 : f32
      %24 = vector.broadcast %cst_18 : f32 to vector<1x128xf32>
      %c0_19 = arith.constant 0 : index
      %c0_20 = arith.constant 0 : index
      %25 = memref.load %arg7[%c0_19, %c0_20] : memref<1x1xf32, #tpu.memory_space<smem>>
      %26 = vector.broadcast %25 : f32 to vector<1x128xf32>
      %27 = arith.addf %24, %26 : vector<1x128xf32>
      %c0_21 = arith.constant 0 : index
      %c0_22 = arith.constant 0 : index
      %28 = vector.load %arg8[%c0_21, %c0_22] : memref<1x128xf32, #tpu.memory_space<vmem>>, vector<1x128xf32>
      tpu.vector_store %arg8[%c0_21, %c0_22], %27 {strides = array<i32>} : memref<1x128xf32, #tpu.memory_space<vmem>>, vector<1x128xf32>,
    } else {
    }
    %c0 = arith.constant 0 : index
    %c0_1 = arith.constant 0 : index
    %3 = vector.load %arg2[%c0, %c0_1] : memref<128x32xf32, #tpu.memory_space<vmem>>, vector<128x32xf32>
    %c0_2 = arith.constant 0 : index
    %c0_3 = arith.constant 0 : index
    %4 = vector.load %arg3[%c0_2, %c0_3] : memref<32x128xf32, #tpu.memory_space<vmem>>, vector<32x128xf32>
    %cst = arith.constant dense<0.000000e+00> : vector<128x128xf32>
    %5 = tpu.matmul %3, %4, %cst {dimension_numbers = #tpu.dot_dimension_numbers<[1], [0], [0], [1], [0, 0, 1, 1], [], []>} : vector<128x32xf32>, vector<32x128xf32>, vector<128x128xf32> -> vector<128x128xf32>
    %c0_4 = arith.constant 0 : index
    %c0_5 = arith.constant 0 : index
    %6 = vector.load %arg5[%c0_4, %c0_5] : memref<128x1xf32, #tpu.memory_space<vmem>>, vector<128x1xf32>
    %c0_6 = arith.constant 0 : index
    %c0_7 = arith.constant 0 : index
    %7 = vector.load %arg6[%c0_6, %c0_7] : memref<1x128xf32, #tpu.memory_space<vmem>>, vector<1x128xf32>
    %8 = vector.broadcast %6 : vector<128x1xf32> to vector<128x128xf32>
    %9 = vector.broadcast %7 : vector<1x128xf32> to vector<128x128xf32>
    %10 = arith.addf %8, %9 : vector<128x128xf32>
    %cst_8 = arith.constant 2.000000e+00 : f32
    %11 = vector.broadcast %cst_8 : f32 to vector<128x128xf32>
    %12 = arith.mulf %11, %5 : vector<128x128xf32>
    %13 = arith.subf %10, %12 : vector<128x128xf32>
    %cst_9 = arith.constant 0.000000e+00 : f32
    %14 = vector.broadcast %cst_9 : f32 to vector<128x128xf32>
    %15 = arith.maximumf %13, %14 : vector<128x128xf32>
    %cst_10 = arith.constant -5.000000e-01 : f32
    %16 = vector.broadcast %cst_10 : f32 to vector<128x128xf32>
    %17 = arith.mulf %16, %15 : vector<128x128xf32>
    %18 = math.exp %17 : vector<128x128xf32>
    %c0_11 = arith.constant 0 : index
    %c0_12 = arith.constant 0 : index
    %19 = vector.load %arg8[%c0_11, %c0_12] : memref<1x128xf32, #tpu.memory_space<vmem>>, vector<1x128xf32>
    %c0_13 = arith.constant 0 : index
    %c0_14 = arith.constant 0 : index
    %20 = vector.load %arg4[%c0_13, %c0_14] : memref<1x128xf32, #tpu.memory_space<vmem>>, vector<1x128xf32>
    %cst_15 = arith.constant dense<0.000000e+00> : vector<1x128xf32>
    %21 = tpu.matmul %20, %18, %cst_15 {dimension_numbers = #tpu.dot_dimension_numbers<[1], [0], [0], [1], [0, 0, 1, 1], [], []>} : vector<1x128xf32>, vector<128x128xf32>, vector<1x128xf32> -> vector<1x128xf32>
    %22 = arith.addf %19, %21 : vector<1x128xf32>
    %c0_16 = arith.constant 0 : index
    %c0_17 = arith.constant 0 : index
    %23 = vector.load %arg8[%c0_16, %c0_17] : memref<1x128xf32, #tpu.memory_space<vmem>>, vector<1x128xf32>
    tpu.vector_store %arg8[%c0_16, %c0_17], %22 {strides = array<i32>} : memref<1x128xf32, #tpu.memory_space<vmem>>, vector<1x128xf32>,
    return
  }
  func.func @transform_0(%arg0: i32, %arg1: i32) -> (i32, i32) {
    %c0_i32 = arith.constant 0 : i32
    %c0_i32_0 = arith.constant 0 : i32
    return %arg1, %c0_i32 : i32, i32
  }
  func.func @transform_1(%arg0: i32, %arg1: i32) -> (i32, i32) {
    %c0_i32 = arith.constant 0 : i32
    %c0_i32_0 = arith.constant 0 : i32
    return %c0_i32, %arg0 : i32, i32
  }
  func.func @transform_2(%arg0: i32, %arg1: i32) -> (i32, i32) {
    %c0_i32 = arith.constant 0 : i32
    %c0_i32_0 = arith.constant 0 : i32
    return %c0_i32, %arg1 : i32, i32
  }
  func.func @transform_3(%arg0: i32, %arg1: i32) -> (i32, i32) {
    %c0_i32 = arith.constant 0 : i32
    %c0_i32_0 = arith.constant 0 : i32
    return %arg1, %c0_i32 : i32, i32
  }
  func.func @transform_4(%arg0: i32, %arg1: i32) -> (i32, i32) {
    %c0_i32 = arith.constant 0 : i32
    %c0_i32_0 = arith.constant 0 : i32
    return %c0_i32, %arg0 : i32, i32
  }
  func.func @transform_5(%arg0: i32, %arg1: i32) -> (i32, i32) {
    %c0_i32 = arith.constant 0 : i32
    %c0_i32_0 = arith.constant 0 : i32
    %c0_i32_1 = arith.constant 0 : i32
    return %c0_i32, %c0_i32_0 : i32, i32
  }
  func.func @transform_6(%arg0: i32, %arg1: i32) -> (i32, i32) {
    %c0_i32 = arith.constant 0 : i32
    %c0_i32_0 = arith.constant 0 : i32
    return %c0_i32, %arg0 : i32, i32
  }
}

</mosaic_0001>

<llo_original>
// kernel: _kernelized_svm_forward.1
$region0: #{_kernelized_svm_forward.1}
  #allocation0 [shape = 'u32[]', space=smem, size = 0x4, offset = 0x4, fixed_abs, tag = 'smem constant byte address 0x4 - core index']
  #allocation1 [shape = 'u32[72,128]{1,0:T(1,128)}', space=vmem, size = 0x9000, scoped, tag = 'internal scratch']
  #allocation2 [shape = 'f32[1,1]{1,0:T(1,128)S(6)}', space=smem, size = 0x200, scoped, tag = 'scoped memory for _kernelized_svm_forward.1']
  %s0 = inlined_call_operand.vmem [shape: f32[128,32], index: 0, kind: input, shape index: {}]
  %s1 = inlined_call_operand.vmem [shape: f32[32,128], index: 1, kind: input, shape index: {}]
  %s2 = inlined_call_operand.vmem [shape: f32[1,128], index: 2, kind: input, shape index: {}]
  %s3 = inlined_call_operand.vmem [shape: f32[128,1], index: 3, kind: input, shape index: {}]
  %s4 = inlined_call_operand.vmem [shape: f32[1,128], index: 4, kind: input, shape index: {}]
  %s5 = inlined_call_operand.<no memory space> [shape: f32[1,1], index: 5, kind: input, shape index: {}]
  %s6 = inlined_call_operand.vmem [shape: f32[1,128], index: 6, kind: output, shape index: {}]
  %s7 = sld [smem:[#allocation0]]
  $region38: #{_kernelized_svm_forward.1} parent=0
    _
  %s9 = ssub.s32 1, %s7
  %s10 = scalar_select 0, %s9, %s7
  %11 = sst [smem:[#allocation2]] %s5
  // Predicated region
  $region2: #{_kernelized_svm_forward.1} parent=0 // pred_check
    _
  $region3: #{_kernelized_svm_forward.1} parent=0 // pred_check_branch
    %13 = sbr.rel (0) target = $region5
  $region4: #{_kernelized_svm_forward.1} parent=0 // pred_region
    _
  $region5: #{_kernelized_svm_forward.1} parent=0 // pred_fallthru
    _
  // Predicated region
  $region6: #{_kernelized_svm_forward.1} parent=0 // pred_check
    _
  $region7: #{_kernelized_svm_forward.1} parent=0 // pred_check_branch
    %15 = sbr.rel (0) target = $region9
  $region8: #{_kernelized_svm_forward.1} parent=0 // pred_region
    _
  $region9: #{_kernelized_svm_forward.1} parent=0 // pred_fallthru
    _
  // Predicated region
  $region10: #{_kernelized_svm_forward.1} parent=0 // pred_check
    _
  $region11: #{_kernelized_svm_forward.1} parent=0 // pred_check_branch
    %17 = sbr.rel (0) target = $region13
  $region12: #{_kernelized_svm_forward.1} parent=0 // pred_region
    _
  $region13: #{_kernelized_svm_forward.1} parent=0 // pred_fallthru
    _
  // Predicated region
  $region14: #{_kernelized_svm_forward.1} parent=0 // pred_check
    _
  $region15: #{_kernelized_svm_forward.1} parent=0 // pred_check_branch
    %19 = sbr.rel (0) target = $region17
  $region16: #{_kernelized_svm_forward.1} parent=0 // pred_region
    _
  $region17: #{_kernelized_svm_forward.1} parent=0 // pred_fallthru
    _
  // Predicated region
  $region18: #{_kernelized_svm_forward.1} parent=0 // pred_check
    _
  $region19: #{_kernelized_svm_forward.1} parent=0 // pred_check_branch
    %21 = sbr.rel (0) target = $region21
  $region20: #{_kernelized_svm_forward.1} parent=0 // pred_region
    _
  $region21: #{_kernelized_svm_forward.1} parent=0 // pred_fallthru
    _
  // Predicated region
  $region22: #{_kernelized_svm_forward.1} parent=0 // pred_check
    _
  $region23: #{_kernelized_svm_forward.1} parent=0 // pred_check_branch
    %23 = sbr.rel (0) target = $region25
  $region24: #{_kernelized_svm_forward.1} parent=0 // pred_region
    _
  $region25: #{_kernelized_svm_forward.1} parent=0 // pred_fallthru
    _
  %p24 = scmp.eq.s32.totalorder 0, 0
  // Predicated region
  $region26: #{_kernelized_svm_forward.1} parent=0 // pred_check
    %p25 = pneg %p24
  $region27: #{_kernelized_svm_forward.1} parent=0 // pred_check_branch
    %27 = sbr.rel (%p25) target = $region29
  $region28: #{_kernelized_svm_forward.1} parent=0 // pred_region
    %s28 = sld [smem:[#allocation2]]
    %v29 = vstv %s28
    %v30 = vadd.f32 %v29, 0.0
    %31 = vst [vmem:[%s6] sm:$0x1] %v30
  $region29: #{_kernelized_svm_forward.1} parent=0 // pred_fallthru
    _
  %v32 = vld [vmem:[%s0] sm:$0xff]
  %v33 = vld [vmem:[%s0 + $0x8] sm:$0xff]
  %v34 = vld [vmem:[%s0 + $0x10] sm:$0xff]
  %v35 = vld [vmem:[%s0 + $0x18] sm:$0xff]
  %v36 = vld [vmem:[%s0 + $0x20] sm:$0xff]
  %v37 = vld [vmem:[%s0 + $0x28] sm:$0xff]
  %v38 = vld [vmem:[%s0 + $0x30] sm:$0xff]
  %v39 = vld [vmem:[%s0 + $0x38] sm:$0xff]
  %v40 = vld [vmem:[%s0 + $0x40] sm:$0xff]
  %v41 = vld [vmem:[%s0 + $0x48] sm:$0xff]
  %v42 = vld [vmem:[%s0 + $0x50] sm:$0xff]
  %v43 = vld [vmem:[%s0 + $0x58] sm:$0xff]
  %v44 = vld [vmem:[%s0 + $0x60] sm:$0xff]
  %v45 = vld [vmem:[%s0 + $0x68] sm:$0xff]
  %v46 = vld [vmem:[%s0 + $0x70] sm:$0xff]
  %v47 = vld [vmem:[%s0 + $0x78] sm:$0xff]
  %v48 = vld [vmem:[%s1] sm:$0xff]
  %v49 = vld [vmem:[%s1 + $0x8] sm:$0xff]
  %v50 = vld [vmem:[%s1 + $0x10] sm:$0xff]
  %v51 = vld [vmem:[%s1 + $0x18] sm:$0xff]
  %vm52 = vcmask 261120
  %v54 = vsel %vm52, %v32, 0
  %v57 = vsel %vm52, %v33, 0
  %v60 = vsel %vm52, %v34, 0
  %v63 = vsel %vm52, %v35, 0
  %v66 = vsel %vm52, %v36, 0
  %v69 = vsel %vm52, %v37, 0
  %v72 = vsel %vm52, %v38, 0
  %v75 = vsel %vm52, %v39, 0
  %v78 = vsel %vm52, %v40, 0
  %v81 = vsel %vm52, %v41, 0
  %v84 = vsel %vm52, %v42, 0
  %v87 = vsel %vm52, %v43, 0
  %v90 = vsel %vm52, %v44, 0
  %v93 = vsel %vm52, %v45, 0
  %v96 = vsel %vm52, %v46, 0
  %v99 = vsel %vm52, %v47, 0
  %101 = vmatpush.msra.mxu0 0.0
  %102 = vmatpush.msra.mxu0 0.0
  %103 = vmatpush.msra.mxu0 0.0
  %104 = vmatpush.msra.mxu0 0.0
  %105 = vmatpush.msra.mxu0 0.0
  %106 = vmatpush.msra.mxu0 0.0
  %107 = vmatpush.msra.mxu0 0.0
  %108 = vmatpush.msra.mxu0 0.0
  %109 = vmatpush.msra.mxu0 0.0
  %110 = vmatpush.msra.mxu0 0.0
  %111 = vmatpush.msra.mxu0 0.0
  %112 = vmatpush.msra.mxu0 0.0
  %113 = vmatpush.msra.mxu0 %v51
  %114 = vmatpush.msra.mxu0 %v50
  %115 = vmatpush.msra.mxu0 %v49
  %116 = vmatpush.msra.mxu0 %v48
  %117 = vmatmul.f32.gmra.mxu0 %v54
  %v118 = vpop.f32.mrf.mxu0
  %v119 = vadd.f32 0.0, %v118
  %120 = vmatmul.f32.gmra.mxu0 %v57
  %v121 = vpop.f32.mrf.mxu0
  %v122 = vadd.f32 0.0, %v121
  %123 = vmatmul.f32.gmra.mxu0 %v60
  %v124 = vpop.f32.mrf.mxu0
  %v125 = vadd.f32 0.0, %v124
  %126 = vmatmul.f32.gmra.mxu0 %v63
  %v127 = vpop.f32.mrf.mxu0
  %v128 = vadd.f32 0.0, %v127
  %129 = vmatmul.f32.gmra.mxu0 %v66
  %v130 = vpop.f32.mrf.mxu0
  %v131 = vadd.f32 0.0, %v130
  %132 = vmatmul.f32.gmra.mxu0 %v69
  %v133 = vpop.f32.mrf.mxu0
  %v134 = vadd.f32 0.0, %v133
  %135 = vmatmul.f32.gmra.mxu0 %v72
  %v136 = vpop.f32.mrf.mxu0
  %v137 = vadd.f32 0.0, %v136
  %138 = vmatmul.f32.gmra.mxu0 %v75
  %v139 = vpop.f32.mrf.mxu0
  %v140 = vadd.f32 0.0, %v139
  %141 = vmatmul.f32.gmra.mxu0 %v78
  %v142 = vpop.f32.mrf.mxu0
  %v143 = vadd.f32 0.0, %v142
  %144 = vmatmul.f32.gmra.mxu0 %v81
  %v145 = vpop.f32.mrf.mxu0
  %v146 = vadd.f32 0.0, %v145
  %147 = vmatmul.f32.gmra.mxu0 %v84
  %v148 = vpop.f32.mrf.mxu0
  %v149 = vadd.f32 0.0, %v148
  %150 = vmatmul.f32.gmra.mxu0 %v87
  %v151 = vpop.f32.mrf.mxu0
  %v152 = vadd.f32 0.0, %v151
  %153 = vmatmul.f32.gmra.mxu0 %v90
  %v154 = vpop.f32.mrf.mxu0
  %v155 = vadd.f32 0.0, %v154
  %156 = vmatmul.f32.gmra.mxu0 %v93
  %v157 = vpop.f32.mrf.mxu0
  %v158 = vadd.f32 0.0, %v157
  %159 = vmatmul.f32.gmra.mxu0 %v96
  %v160 = vpop.f32.mrf.mxu0
  %v161 = vadd.f32 0.0, %v160
  %162 = vmatmul.f32.gmra.mxu0 %v99
  %v163 = vpop.f32.mrf.mxu0
  %v164 = vadd.f32 0.0, %v163
  %165 = vdwg.mxu0
  %v166 = vld [vmem:[%s3] sm:$0xff]
  %v167 = vld [vmem:[%s3 + $0x8] sm:$0xff]
  %v168 = vld [vmem:[%s3 + $0x10] sm:$0xff]
  %v169 = vld [vmem:[%s3 + $0x18] sm:$0xff]
  %v170 = vld [vmem:[%s3 + $0x20] sm:$0xff]
  %v171 = vld [vmem:[%s3 + $0x28] sm:$0xff]
  %v172 = vld [vmem:[%s3 + $0x30] sm:$0xff]
  %v173 = vld [vmem:[%s3 + $0x38] sm:$0xff]
  %v174 = vld [vmem:[%s3 + $0x40] sm:$0xff]
  %v175 = vld [vmem:[%s3 + $0x48] sm:$0xff]
  %v176 = vld [vmem:[%s3 + $0x50] sm:$0xff]
  %v177 = vld [vmem:[%s3 + $0x58] sm:$0xff]
  %v178 = vld [vmem:[%s3 + $0x60] sm:$0xff]
  %v179 = vld [vmem:[%s3 + $0x68] sm:$0xff]
  %v180 = vld [vmem:[%s3 + $0x70] sm:$0xff]
  %v181 = vld [vmem:[%s3 + $0x78] sm:$0xff]
  %v182 = vld [vmem:[%s4] sm:$0x1]
  %184 = vset.pattern.permute.xlu0 0
  %185 = vperm.xlu0 %184, %v166
  %v186 = vpop.permute.xlu0 %185
  %189 = vset.pattern.permute.xlu0 0
  %190 = vperm.xlu0 %189, %v167
  %v191 = vpop.permute.xlu0 %190
  %194 = vset.pattern.permute.xlu0 0
  %195 = vperm.xlu0 %194, %v168
  %v196 = vpop.permute.xlu0 %195
  %199 = vset.pattern.permute.xlu0 0
  %200 = vperm.xlu0 %199, %v169
  %v201 = vpop.permute.xlu0 %200
  %204 = vset.pattern.permute.xlu0 0
  %205 = vperm.xlu0 %204, %v170
  %v206 = vpop.permute.xlu0 %205
  %209 = vset.pattern.permute.xlu0 0
  %210 = vperm.xlu0 %209, %v171
  %v211 = vpop.permute.xlu0 %210
  %214 = vset.pattern.permute.xlu0 0
  %215 = vperm.xlu0 %214, %v172
  %v216 = vpop.permute.xlu0 %215
  %219 = vset.pattern.permute.xlu0 0
  %220 = vperm.xlu0 %219, %v173
  %v221 = vpop.permute.xlu0 %220
  %224 = vset.pattern.permute.xlu0 0
  %225 = vperm.xlu0 %224, %v174
  %v226 = vpop.permute.xlu0 %225
  %229 = vset.pattern.permute.xlu0 0
  %230 = vperm.xlu0 %229, %v175
  %v231 = vpop.permute.xlu0 %230
  %234 = vset.pattern.permute.xlu0 0
  %235 = vperm.xlu0 %234, %v176
  %v236 = vpop.permute.xlu0 %235
  %239 = vset.pattern.permute.xlu0 0
  %240 = vperm.xlu0 %239, %v177
  %v241 = vpop.permute.xlu0 %240
  %244 = vset.pattern.permute.xlu0 0
  %245 = vperm.xlu0 %244, %v178
  %v246 = vpop.permute.xlu0 %245
  %249 = vset.pattern.permute.xlu0 0
  %250 = vperm.xlu0 %249, %v179
  %v251 = vpop.permute.xlu0 %250
  %254 = vset.pattern.permute.xlu0 0
  %255 = vperm.xlu0 %254, %v180
  %v256 = vpop.permute.xlu0 %255
  %259 = vset.pattern.permute.xlu0 0
  %260 = vperm.xlu0 %259, %v181
  %v261 = vpop.permute.xlu0 %260
  %v264 = vperm.slane %v182, 0
  %v266 = vadd.f32 %v186, %v264
  %v267 = vadd.f32 %v191, %v264
  %v268 = vadd.f32 %v196, %v264
  %v269 = vadd.f32 %v201, %v264
  %v270 = vadd.f32 %v206, %v264
  %v271 = vadd.f32 %v211, %v264
  %v272 = vadd.f32 %v216, %v264
  %v273 = vadd.f32 %v221, %v264
  %v274 = vadd.f32 %v226, %v264
  %v275 = vadd.f32 %v231, %v264
  %v276 = vadd.f32 %v236, %v264
  %v277 = vadd.f32 %v241, %v264
  %v278 = vadd.f32 %v246, %v264
  %v279 = vadd.f32 %v251, %v264
  %v280 = vadd.f32 %v256, %v264
  %v281 = vadd.f32 %v261, %v264
  %v282 = vmul.f32 %v119, 2.0
  %v283 = vmul.f32 %v122, 2.0
  %v284 = vmul.f32 %v125, 2.0
  %v285 = vmul.f32 %v128, 2.0
  %v286 = vmul.f32 %v131, 2.0
  %v287 = vmul.f32 %v134, 2.0
  %v288 = vmul.f32 %v137, 2.0
  %v289 = vmul.f32 %v140, 2.0
  %v290 = vmul.f32 %v143, 2.0
  %v291 = vmul.f32 %v146, 2.0
  %v292 = vmul.f32 %v149, 2.0
  %v293 = vmul.f32 %v152, 2.0
  %v294 = vmul.f32 %v155, 2.0
  %v295 = vmul.f32 %v158, 2.0
  %v296 = vmul.f32 %v161, 2.0
  %v297 = vmul.f32 %v164, 2.0
  %v298 = vsub.f32 %v266, %v282
  %v299 = vsub.f32 %v267, %v283
  %v300 = vsub.f32 %v268, %v284
  %v301 = vsub.f32 %v269, %v285
  %v302 = vsub.f32 %v270, %v286
  %v303 = vsub.f32 %v271, %v287
  %v304 = vsub.f32 %v272, %v288
  %v305 = vsub.f32 %v273, %v289
  %v306 = vsub.f32 %v274, %v290
  %v307 = vsub.f32 %v275, %v291
  %v308 = vsub.f32 %v276, %v292
  %v309 = vsub.f32 %v277, %v293
  %v310 = vsub.f32 %v278, %v294
  %v311 = vsub.f32 %v279, %v295
  %v312 = vsub.f32 %v280, %v296
  %v313 = vsub.f32 %v281, %v297
  %v314 = vmax.f32 %v298, 0.0
  %v315 = vmax.f32 %v299, 0.0
  %v316 = vmax.f32 %v300, 0.0
  %v317 = vmax.f32 %v301, 0.0
  %v318 = vmax.f32 %v302, 0.0
  %v319 = vmax.f32 %v303, 0.0
  %v320 = vmax.f32 %v304, 0.0
  %v321 = vmax.f32 %v305, 0.0
  %v322 = vmax.f32 %v306, 0.0
  %v323 = vmax.f32 %v307, 0.0
  %v324 = vmax.f32 %v308, 0.0
  %v325 = vmax.f32 %v309, 0.0
  %v326 = vmax.f32 %v310, 0.0
  %v327 = vmax.f32 %v311, 0.0
  %v328 = vmax.f32 %v312, 0.0
  %v329 = vmax.f32 %v313, 0.0
  %v330 = vmul.f32 %v314, -0.5
  %v331 = vmul.f32 %v315, -0.5
  %v332 = vmul.f32 %v316, -0.5
  %v333 = vmul.f32 %v317, -0.5
  %v334 = vmul.f32 %v318, -0.5
  %v335 = vmul.f32 %v319, -0.5
  %v336 = vmul.f32 %v320, -0.5
  %v337 = vmul.f32 %v321, -0.5
  %v338 = vmul.f32 %v322, -0.5
  %v339 = vmul.f32 %v323, -0.5
  %v340 = vmul.f32 %v324, -0.5
  %v341 = vmul.f32 %v325, -0.5
  %v342 = vmul.f32 %v326, -0.5
  %v343 = vmul.f32 %v327, -0.5
  %v344 = vmul.f32 %v328, -0.5
  %v345 = vmul.f32 %v329, -0.5
  %v346 = vmul.f32 %v330, 1.442695
  %v347 = vpow.pop %v346
  %v348 = vmul.f32 %v331, 1.442695
  %v349 = vpow.pop %v348
  %v350 = vmul.f32 %v332, 1.442695
  %v351 = vpow.pop %v350
  %v352 = vmul.f32 %v333, 1.442695
  %v353 = vpow.pop %v352
  %v354 = vmul.f32 %v334, 1.442695
  %v355 = vpow.pop %v354
  %v356 = vmul.f32 %v335, 1.442695
  %v357 = vpow.pop %v356
  %v358 = vmul.f32 %v336, 1.442695
  %v359 = vpow.pop %v358
  %v360 = vmul.f32 %v337, 1.442695
  %v361 = vpow.pop %v360
  %v362 = vmul.f32 %v338, 1.442695
  %v363 = vpow.pop %v362
  %v364 = vmul.f32 %v339, 1.442695
  %v365 = vpow.pop %v364
  %v366 = vmul.f32 %v340, 1.442695
  %v367 = vpow.pop %v366
  %v368 = vmul.f32 %v341, 1.442695
  %v369 = vpow.pop %v368
  %v370 = vmul.f32 %v342, 1.442695
  %v371 = vpow.pop %v370
  %v372 = vmul.f32 %v343, 1.442695
  %v373 = vpow.pop %v372
  %v374 = vmul.f32 %v344, 1.442695
  %v375 = vpow.pop %v374
  %v376 = vmul.f32 %v345, 1.442695
  %v377 = vpow.pop %v376
  %v378 = vld [vmem:[%s6] sm:$0x1]
  %v379 = vld [vmem:[%s2] sm:$0x1]
  %380 = vmatpush.msra.mxu0 %v377
  %381 = vmatpush.msra.mxu0 %v375
  %382 = vmatpush.msra.mxu0 %v373
  %383 = vmatpush.msra.mxu0 %v371
  %384 = vmatpush.msra.mxu0 %v369
  %385 = vmatpush.msra.mxu0 %v367
  %386 = vmatpush.msra.mxu0 %v365
  %387 = vmatpush.msra.mxu0 %v363
  %388 = vmatpush.msra.mxu0 %v361
  %389 = vmatpush.msra.mxu0 %v359
  %390 = vmatpush.msra.mxu0 %v357
  %391 = vmatpush.msra.mxu0 %v355
  %392 = vmatpush.msra.mxu0 %v353
  %393 = vmatpush.msra.mxu0 %v351
  %394 = vmatpush.msra.mxu0 %v349
  %395 = vmatpush.msra.mxu0 %v347
  %396 = vmatmul.f32.gmra.mxu0 %v379
  %v397 = vpop.f32.mrf.mxu0
  %v398 = vadd.f32 0.0, %v397
  %399 = vdwg.mxu0
  %v400 = vadd.f32 %v378, %v398
  %401 = vst [vmem:[%s6] sm:$0x1] %v400
  // Predicated region
  $region30: #{_kernelized_svm_forward.1} parent=0 // pred_check
    _
  $region31: #{_kernelized_svm_forward.1} parent=0 // pred_check_branch
    %403 = sbr.rel (0) target = $region33
  $region32: #{_kernelized_svm_forward.1} parent=0 // pred_region
    _
  $region33: #{_kernelized_svm_forward.1} parent=0 // pred_fallthru
    _
  // Predicated region
  $region34: #{_kernelized_svm_forward.1} parent=0 // pred_check
    _
  $region35: #{_kernelized_svm_forward.1} parent=0 // pred_check_branch
    %405 = sbr.rel (0) target = $region37
  $region36: #{_kernelized_svm_forward.1} parent=0 // pred_region
    _
  $region37: #{_kernelized_svm_forward.1} parent=0 // pred_fallthru
    _

</llo_original>
